<compile_context>
chip_gen: v7x
topology: tpu7x:2x2x1
jax: 0.10.0
libtpu: 0.0.40
codegen_flags: <defaults>
</compile_context>

<pallas_src>
import jax
import jax.numpy as jnp
from jax.experimental import pallas as pl
from jax.experimental.pallas import tpu as pltpu

EPS = 1e-5


def _linear_bn_relu_kernel(x_ref, w_ref, p_ref, o_ref, acc_ref):
    k = pl.program_id(1)

    @pl.when(k == 0)
    def _():
        acc_ref[...] = jnp.zeros_like(acc_ref)

    # Linear: y += x_blk @ W_blk^T on the MXU with bf16 operands, f32 accumulation.
    # Weight stays in PyTorch (outChs, inChs) layout; contract dim 1 of both.
    # TODO(synk): dump pl.lower_as_mlir and confirm no per-tile vxpose is emitted
    # for the transposed-RHS contraction; if it is, pre-transpose W once in the wrapper.
    acc_ref[...] += jax.lax.dot_general(
        x_ref[...].astype(jnp.bfloat16),
        w_ref[...].astype(jnp.bfloat16),
        dimension_numbers=(((1,), (1,)), ((), ())),
        preferred_element_type=jnp.float32,
    )

    @pl.when(k == pl.num_programs(1) - 1)
    def _():
        y = acc_ref[...]                                  # (N, tn) f32, full-K result
        n = y.shape[0]
        inv_n = jnp.float32(1.0 / n)

        # BatchNorm1d training-mode stats over the batch axis (biased variance).
        # Exact because the full batch is resident in every feature tile.
        if n >= 256:
            # Large batch: column sums via MXU contractions (ones(1,N) @ ...)
            # instead of ~N/8 sublane-reduction steps per column.
            ones = jnp.ones((1, n), jnp.float32)
            s1 = jax.lax.dot_general(
                ones, y, dimension_numbers=(((1,), (0,)), ((), ())),
                preferred_element_type=jnp.float32)
            s2 = jax.lax.dot_general(
                ones, y * y, dimension_numbers=(((1,), (0,)), ((), ())),
                preferred_element_type=jnp.float32)
        else:
            s1 = jnp.sum(y, axis=0, keepdims=True)
            s2 = jnp.sum(y * y, axis=0, keepdims=True)

        mean = s1 * inv_n                                 # (1, tn)
        # One-pass variance; clamp so cancellation can never feed rsqrt a negative.
        var = jnp.maximum(s2 * inv_n - mean * mean, 0.0)  # (1, tn)

        gamma = p_ref[0:1, :]                             # (1, tn)
        beta = p_ref[1:2, :]                              # (1, tn)
        scale = gamma * jax.lax.rsqrt(var + EPS)
        shift = beta - mean * scale

        # Fused BN + ReLU epilogue.
        o_ref[...] = jnp.maximum(y * scale + shift, 0.0).astype(o_ref.dtype)


def linear_layer_forward(x, weight, bias, gamma, beta, out_dtype=None):
    """x: (N, inChs); weight: (outChs, inChs) PyTorch layout; bias/gamma/beta: (outChs,).

    `bias` is accepted for API parity but intentionally unused: with training-mode
    BatchNorm immediately after the linear, the batch-mean subtraction cancels any
    per-feature constant bias exactly. Do NOT reuse this kernel for eval-mode
    (running-stats) BatchNorm.
    """
    del bias
    n, in_chs = x.shape
    out_chs = weight.shape[0]
    out_dtype = out_dtype or x.dtype

    # Pad feature dims up to lane-dense multiples of 128 (unmasked vst, clean K tiles).
    pad_in = (-in_chs) % 128
    pad_out = (-out_chs) % 128
    if pad_in:
        x = jnp.pad(x, ((0, 0), (0, pad_in)))
        weight = jnp.pad(weight, ((0, 0), (0, pad_in)))
    if pad_out:
        weight = jnp.pad(weight, ((0, pad_out), (0, 0)))
        gamma = jnp.pad(gamma, (0, pad_out), constant_values=1.0)
        beta = jnp.pad(beta, (0, pad_out))
    in_p = in_chs + pad_in
    out_p = out_chs + pad_out

    # Pack the small per-feature params into one (2, outChs) array -> one DMA.
    params = jnp.stack([gamma, beta], axis=0)

    # Feature-tile width: lane-dense, and >=2 tiles when possible so the
    # "parallel" axis spans both v7x TensorCores (no effect on v5e/v6e).
    if out_p % 256 == 0 and out_p <= 512:
        tn = out_p // 2
    else:
        tn = min(out_p, 512)
        while out_p % tn != 0:
            tn -= 128

    # K-tile: multiple of 128 dividing in_p; 256 matches v6e/v7x MXU depth and
    # keeps VMEM bounded for arbitrary inChs.
    tk = min(in_p, 256)
    while in_p % tk != 0:
        tk -= 128

    grid = (out_p // tn, in_p // tk)

    # Explicit scoped-VMEM budget from the actual block sizes (+25% headroom):
    # double-buffered x / weight / out / params blocks plus the f32 accumulator.
    x_blk = n * tk * x.dtype.itemsize
    w_blk = tn * tk * weight.dtype.itemsize
    o_blk = n * tn * jnp.dtype(out_dtype).itemsize
    p_blk = 2 * tn * 4
    acc_blk = n * tn * 4
    vmem_bytes = int(1.25 * (2 * (x_blk + w_blk + o_blk + p_blk) + acc_blk))
    vmem_bytes = max(vmem_bytes, 4 << 20)
    vmem_bytes = min(vmem_bytes, 64 << 20)

    out = pl.pallas_call(
        _linear_bn_relu_kernel,
        out_shape=jax.ShapeDtypeStruct((n, out_p), out_dtype),
        grid=grid,
        in_specs=[
            pl.BlockSpec((n, tk), lambda j, k: (0, k)),    # x: full batch, K tile
            pl.BlockSpec((tn, tk), lambda j, k: (j, k)),   # weight: (outChs tile, K tile)
            pl.BlockSpec((2, tn), lambda j, k: (0, j)),    # packed gamma/beta
        ],
        out_specs=pl.BlockSpec((n, tn), lambda j, k: (0, j)),
        scratch_shapes=[pltpu.VMEM((n, tn), jnp.float32)],  # f32 K-accumulator
        compiler_params=pltpu.CompilerParams(
            dimension_semantics=("parallel", "arbitrary"),
            vmem_limit_bytes=vmem_bytes,
        ),
    )(x, weight, params)

    return out[:, :out_chs] if pad_out else out


def reference_forward(x, weight, bias, gamma, beta):
    y = x @ weight.T + bias
    mean = jnp.mean(y, axis=0, keepdims=True)
    var = jnp.mean((y - mean) ** 2, axis=0, keepdims=True)
    y = (y - mean) / jnp.sqrt(var + EPS) * gamma + beta
    return jnp.maximum(y, 0.0)


if __name__ == "__main__":
    # N >= 128 so the MXU rows are actually filled; 2 feature tiles (parallel
    # axis) and 2 K tiles (accumulator path) are both exercised.
    N, IN_CHS, OUT_CHS = 128, 512, 256

    key = jax.random.PRNGKey(0)
    kx, kw, kb = jax.random.split(key, 3)

    x = jax.random.normal(kx, (N, IN_CHS), dtype=jnp.float32)

    # Deterministic parameter init (mimics nn.Linear's uniform(-1/sqrt(in), 1/sqrt(in))).
    bound = 1.0 / (IN_CHS ** 0.5)
    weight = jax.random.uniform(kw, (OUT_CHS, IN_CHS), jnp.float32, -bound, bound)
    bias = jax.random.uniform(kb, (OUT_CHS,), jnp.float32, -bound, bound)
    gamma = jnp.ones((OUT_CHS,), jnp.float32)   # BatchNorm1d weight init
    beta = jnp.zeros((OUT_CHS,), jnp.float32)   # BatchNorm1d bias init

    out = linear_layer_forward(x, weight, bias, gamma, beta)
    out = jax.block_until_ready(out)

    ref = reference_forward(x, weight, bias, gamma, beta)
    assert out.shape == (N, OUT_CHS)
    # Tolerance accounts for the bf16 MXU operands (stats/epilogue stay f32).
    assert jnp.allclose(out, ref, atol=3e-2, rtol=3e-2), "mismatch vs reference"

    print("KERNEL_OK")
</pallas_src>

<mosaic_0001>
module attributes {stable_mosaic.version = 11 : i64} {
  func.func @_linear_bn_relu_kernel(%arg0: i32, %arg1: i32, %arg2: memref<128x256xf32, #tpu.memory_space<vmem>>, %arg3: memref<128x256xf32, #tpu.memory_space<vmem>>, %arg4: memref<2x128xf32, #tpu.memory_space<vmem>>, %arg5: memref<128x128xf32, #tpu.memory_space<vmem>>, %arg6: memref<128x128xf32, #tpu.memory_space<vmem>>) attributes {dimension_semantics = [#tpu.dimension_semantics<parallel>, #tpu.dimension_semantics<arbitrary>], iteration_bounds = array<i64: 2, 2>, scalar_prefetch = 0 : i64, scratch_operands = 1 : i64, tpu.core_type = #tpu.core_type<tc>, window_params = [{transform_indices = @transform_0, window_bounds = array<i64: 128, 256>}, {transform_indices = @transform_1, window_bounds = array<i64: 128, 256>}, {transform_indices = @transform_2, window_bounds = array<i64: 2, 128>}, {transform_indices = @transform_3, window_bounds = array<i64: 128, 128>}]} {
    %c0_i32 = arith.constant 0 : i32
    %0 = arith.cmpi eq, %arg1, %c0_i32 : i32
    %1 = arith.extui %0 : i1 to i32
    %c0_i32_0 = arith.constant 0 : i32
    %2 = arith.cmpi ne, %1, %c0_i32_0 : i32
    scf.if %2 {
      %cst_9 = arith.constant 0.000000e+00 : f32
      %14 = vector.broadcast %cst_9 : f32 to vector<128x128xf32>
      %c0_10 = arith.constant 0 : index
      %c0_11 = arith.constant 0 : index
      %15 = vector.load %arg6[%c0_10, %c0_11] : memref<128x128xf32, #tpu.memory_space<vmem>>, vector<128x128xf32>
      tpu.vector_store %arg6[%c0_10, %c0_11], %14 {strides = array<i32>} : memref<128x128xf32, #tpu.memory_space<vmem>>, vector<128x128xf32>,
    } else {
    }
    %c0 = arith.constant 0 : index
    %c0_1 = arith.constant 0 : index
    %3 = vector.load %arg6[%c0, %c0_1] : memref<128x128xf32, #tpu.memory_space<vmem>>, vector<128x128xf32>
    %c0_2 = arith.constant 0 : index
    %c0_3 = arith.constant 0 : index
    %4 = vector.load %arg2[%c0_2, %c0_3] : memref<128x256xf32, #tpu.memory_space<vmem>>, vector<128x256xf32>
    %5 = arith.truncf %4 : vector<128x256xf32> to vector<128x256xbf16>
    %c0_4 = arith.constant 0 : index
    %c0_5 = arith.constant 0 : index
    %6 = vector.load %arg3[%c0_4, %c0_5] : memref<128x256xf32, #tpu.memory_space<vmem>>, vector<128x256xf32>
    %7 = arith.truncf %6 : vector<128x256xf32> to vector<128x256xbf16>
    %cst = arith.constant dense<0.000000e+00> : vector<128x128xf32>
    %8 = tpu.matmul %5, %7, %cst {dimension_numbers = #tpu.dot_dimension_numbers<[1], [1], [0], [0], [0, 0, 1, 0], [], []>} : vector<128x256xbf16>, vector<128x256xbf16>, vector<128x128xf32> -> vector<128x128xf32>
    %9 = arith.addf %3, %8 : vector<128x128xf32>
    %c0_6 = arith.constant 0 : index
    %c0_7 = arith.constant 0 : index
    %10 = vector.load %arg6[%c0_6, %c0_7] : memref<128x128xf32, #tpu.memory_space<vmem>>, vector<128x128xf32>
    tpu.vector_store %arg6[%c0_6, %c0_7], %9 {strides = array<i32>} : memref<128x128xf32, #tpu.memory_space<vmem>>, vector<128x128xf32>,
    %c1_i32 = arith.constant 1 : i32
    %11 = arith.cmpi eq, %arg1, %c1_i32 : i32
    %12 = arith.extui %11 : i1 to i32
    %c0_i32_8 = arith.constant 0 : i32
    %13 = arith.cmpi ne, %12, %c0_i32_8 : i32
    scf.if %13 {
      %c0_9 = arith.constant 0 : index
      %c0_10 = arith.constant 0 : index
      %14 = vector.load %arg6[%c0_9, %c0_10] : memref<128x128xf32, #tpu.memory_space<vmem>>, vector<128x128xf32>
      %cst_11 = arith.constant dense<0.000000e+00> : vector<128xf32>
      %15 = vector.multi_reduction <add>, %14, %cst_11 [0] : vector<128x128xf32> to vector<128xf32>
      %16 = vector.shape_cast %15 : vector<128xf32> to vector<1x128xf32>
      %17 = arith.mulf %14, %14 : vector<128x128xf32>
      %cst_12 = arith.constant dense<0.000000e+00> : vector<128xf32>
      %18 = vector.multi_reduction <add>, %17, %cst_12 [0] : vector<128x128xf32> to vector<128xf32>
      %19 = vector.shape_cast %18 : vector<128xf32> to vector<1x128xf32>
      %cst_13 = arith.constant 7.812500e-03 : f32
      %20 = vector.broadcast %cst_13 : f32 to vector<1x128xf32>
      %21 = arith.mulf %16, %20 : vector<1x128xf32>
      %cst_14 = arith.constant 7.812500e-03 : f32
      %22 = vector.broadcast %cst_14 : f32 to vector<1x128xf32>
      %23 = arith.mulf %19, %22 : vector<1x128xf32>
      %24 = arith.mulf %21, %21 : vector<1x128xf32>
      %25 = arith.subf %23, %24 : vector<1x128xf32>
      %cst_15 = arith.constant 0.000000e+00 : f32
      %26 = vector.broadcast %cst_15 : f32 to vector<1x128xf32>
      %27 = arith.maximumf %25, %26 : vector<1x128xf32>
      %c0_16 = arith.constant 0 : index
      %c0_17 = arith.constant 0 : index
      %28 = vector.load %arg4[%c0_16, %c0_17] : memref<2x128xf32, #tpu.memory_space<vmem>>, vector<1x128xf32>
      %c1 = arith.constant 1 : index
      %c0_18 = arith.constant 0 : index
      %29 = vector.load %arg4[%c1, %c0_18] : memref<2x128xf32, #tpu.memory_space<vmem>>, vector<1x128xf32>
      %cst_19 = arith.constant 9.99999974E-6 : f32
      %30 = vector.broadcast %cst_19 : f32 to vector<1x128xf32>
      %31 = arith.addf %27, %30 : vector<1x128xf32>
      %32 = math.rsqrt %31 : vector<1x128xf32>
      %33 = arith.mulf %28, %32 : vector<1x128xf32>
      %34 = arith.mulf %21, %33 : vector<1x128xf32>
      %35 = arith.subf %29, %34 : vector<1x128xf32>
      %36 = vector.broadcast %33 : vector<1x128xf32> to vector<128x128xf32>
      %37 = arith.mulf %14, %36 : vector<128x128xf32>
      %38 = vector.broadcast %35 : vector<1x128xf32> to vector<128x128xf32>
      %39 = arith.addf %37, %38 : vector<128x128xf32>
      %cst_20 = arith.constant 0.000000e+00 : f32
      %40 = vector.broadcast %cst_20 : f32 to vector<128x128xf32>
      %41 = arith.maximumf %39, %40 : vector<128x128xf32>
      %c0_21 = arith.constant 0 : index
      %c0_22 = arith.constant 0 : index
      %42 = vector.load %arg5[%c0_21, %c0_22] : memref<128x128xf32, #tpu.memory_space<vmem>>, vector<128x128xf32>
      tpu.vector_store %arg5[%c0_21, %c0_22], %41 {strides = array<i32>} : memref<128x128xf32, #tpu.memory_space<vmem>>, vector<128x128xf32>,
    } else {
    }
    return
  }
  func.func @transform_0(%arg0: i32, %arg1: i32) -> (i32, i32) {
    %c0_i32 = arith.constant 0 : i32
    %c0_i32_0 = arith.constant 0 : i32
    return %c0_i32, %arg1 : i32, i32
  }
  func.func @transform_1(%arg0: i32, %arg1: i32) -> (i32, i32) {
    %c0_i32 = arith.constant 0 : i32
    return %arg0, %arg1 : i32, i32
  }
  func.func @transform_2(%arg0: i32, %arg1: i32) -> (i32, i32) {
    %c0_i32 = arith.constant 0 : i32
    %c0_i32_0 = arith.constant 0 : i32
    return %c0_i32, %arg0 : i32, i32
  }
  func.func @transform_3(%arg0: i32, %arg1: i32) -> (i32, i32) {
    %c0_i32 = arith.constant 0 : i32
    %c0_i32_0 = arith.constant 0 : i32
    return %c0_i32, %arg0 : i32, i32
  }
}

</mosaic_0001>

<llo_original>
// kernel: tpu_custom_call.1
$region0: #{tpu_custom_call.1}
  #allocation0 [shape = 'u32[]', space=smem, size = 0x4, offset = 0x4, fixed_abs, tag = 'smem constant byte address 0x4 - core index']
  #allocation1 [shape = 'u32[144,128]{1,0:T(1,128)}', space=vmem, size = 0x12000, scoped, tag = 'internal scratch']
  #allocation2 [shape = 'f32[128,128]{1,0:T(8,128)}', space=vmem, size = 0x10000, scoped, tag = 'scratch operand']
  %s0 = inlined_call_operand.hbm [shape: f32[128,512], index: 0, kind: input, shape index: {}]
  %s1 = inlined_call_operand.hbm [shape: f32[256,512], index: 1, kind: input, shape index: {}]
  %s2 = inlined_call_operand.vmem [shape: f32[2,256], index: 2, kind: input, shape index: {}]
  %s3 = inlined_call_operand.hbm [shape: f32[128,256], index: 3, kind: output, shape index: {}]
  %s4 = sld [smem:[#allocation0]]
  $region61: #{tpu_custom_call.1} parent=0
    _
  %s6 = ssub.s32 1, %s4
  %s7 = scalar_select 0, %s6, %s4
  $region1: #{tpu_custom_call.1} parent=0
    #allocation3 [shape = 'u8[262144]{0}', space=vmem, size = 0x40000, scoped, tag = 'input window, operand 0']
    #allocation4 [shape = 's32[2]{0}', space=sflag, size = 0x8, scoped, tag = 'scoped memory for tpu_custom_call.1']
    #allocation5 [shape = 's32[2]{0}', space=sflag, size = 0x8, scoped, tag = 'scoped memory for tpu_custom_call.1']
    #allocation6 [shape = 'u8[262144]{0}', space=vmem, size = 0x40000, scoped, tag = 'input window, operand 1']
    #allocation7 [shape = 's32[2]{0}', space=sflag, size = 0x8, scoped, tag = 'scoped memory for tpu_custom_call.1']
    #allocation8 [shape = 'u8[131072]{0}', space=vmem, size = 0x20000, scoped, tag = 'output window, operand 0']
    %8 = vsyncpa [#allocation4], 0
    %s9 = scalar_lea.sflag [#allocation4], 1
    %10 = vsyncpa %s9, 0
    %11 = vsyncpa [#allocation7], 0
    %s12 = scalar_lea.sflag [#allocation7], 1
    %13 = vsyncpa %s12, 0
    %14 = vsyncpa [#allocation5], 0
    %s15 = scalar_lea.sflag [#allocation5], 1
    %16 = vsyncpa %s15, 0
    loop: start=0, step=1, limit=6
    $region2: #{tpu_custom_call.1} parent=1 // loop_pre_header
      _
    $region3: #{tpu_custom_call.1} parent=1 // loop_header
      %s18 = sphi 0, %s22
      %p19 = scmp.ge.s32.totalorder %s18, 6
      %s25 = sphi 0, %s37
      %s26 = sphi 0, %s33
      %s27 = sphi 0, %s25
      %s28 = sphi 0, %s26
      %s29 = sphi 0, %s27
      %s30 = sphi 0, %s28
      %s40 = sphi 0, %s42
      %s43 = sphi 0, %s40
      %s44 = sphi 0, %s43
      %s60 = sphi 0, %s44
      %s68 = sphi 0, %s70
      %s71 = sphi 0, %s68
      %s72 = sphi 0, %s71
      %s88 = sphi 0, %s72
      %s94 = sphi 0, %s96
      %s97 = sphi 0, %s94
      %s98 = sphi 0, %s97
      %s114 = sphi 0, %s98
      %s120 = sphi 0, %s122
      %s123 = sphi 0, %s120
      %s124 = sphi 0, %s123
      %s140 = sphi 0, %s124
    $region4: #{tpu_custom_call.1} parent=1 // loop_header_branch
      %21 = sbr.rel (%p19) target = $region8
    $region5: #{tpu_custom_call.1} parent=1 // loop_body
      %s23 = ssub.s32 %s18, 1
      %s24 = ssub.s32 %s18, 2
      %s31 = sadd.s32 1, %s26
      %p32 = scmp.ge.s32.totalorder %s31, 2
      %s33 = scalar_select %p32, 0, %s31
      %s34 = sadd.s32 1, %s25
      %s35 = scalar_select %p32, %s34, %s25
      %p36 = scmp.ge.s32.totalorder %s35, 2
      %s37 = scalar_select %p36, 0, %s35
      %s38 = ssub.s32 %s26, %s33
      %p39 = scmp.eq.s32.totalorder %s38, 0
      %s41 = sadd.s32 %s40, 1
      %s42 = scalar_select %p39, %s40, %s41
      %p45 = pneg %p39
      %p46 = scmp.eq.s32.totalorder %s18, 3
      %p47 = por %p45, %p46
      %p48 = scmp.ne.s32.totalorder %s40, %s43
      %p49 = scmp.eq.s32.totalorder %s18, 0
      %p50 = por %p48, %p49
      %p51 = scmp.ne.s32.totalorder %s40, %s43
      %p52 = scmp.eq.s32.totalorder %s23, 3
      %p53 = por %p51, %p52
      %p54 = scmp.ne.s32.totalorder %s43, %s44
      %p55 = scmp.eq.s32.totalorder %s23, 0
      %p56 = por %p54, %p55
      %p57 = scmp.ne.s32.totalorder %s43, %s44
      %p58 = scmp.eq.s32.totalorder %s24, 3
      %p59 = por %p57, %p58
      %p61 = scmp.ne.s32.totalorder %s44, %s60
      %p62 = scmp.eq.s32.totalorder %s24, 0
      %p63 = por %p61, %p62
      %s64 = ssub.s32 %s25, %s37
      %s65 = ssub.s32 %s26, %s33
      %s66 = sor.u32 %s64, %s65
      %p67 = scmp.eq.s32.totalorder %s66, 0
      %s69 = sadd.s32 %s68, 1
      %s70 = scalar_select %p67, %s68, %s69
      %p73 = pneg %p67
      %p74 = scmp.eq.s32.totalorder %s18, 3
      %p75 = por %p73, %p74
      %p76 = scmp.ne.s32.totalorder %s68, %s71
      %p77 = scmp.eq.s32.totalorder %s18, 0
      %p78 = por %p76, %p77
      %p79 = scmp.ne.s32.totalorder %s68, %s71
      %p80 = scmp.eq.s32.totalorder %s23, 3
      %p81 = por %p79, %p80
      %p82 = scmp.ne.s32.totalorder %s71, %s72
      %p83 = scmp.eq.s32.totalorder %s23, 0
      %p84 = por %p82, %p83
      %p85 = scmp.ne.s32.totalorder %s71, %s72
      %p86 = scmp.eq.s32.totalorder %s24, 3
      %p87 = por %p85, %p86
      %p89 = scmp.ne.s32.totalorder %s72, %s88
      %p90 = scmp.eq.s32.totalorder %s24, 0
      %p91 = por %p89, %p90
      %s92 = ssub.s32 %s25, %s37
      %p93 = scmp.eq.s32.totalorder %s92, 0
      %s95 = sadd.s32 %s94, 1
      %s96 = scalar_select %p93, %s94, %s95
      %p99 = pneg %p93
      %p100 = scmp.eq.s32.totalorder %s18, 3
      %p101 = por %p99, %p100
      %p102 = scmp.ne.s32.totalorder %s94, %s97
      %p103 = scmp.eq.s32.totalorder %s18, 0
      %p104 = por %p102, %p103
      %p105 = scmp.ne.s32.totalorder %s94, %s97
      %p106 = scmp.eq.s32.totalorder %s23, 3
      %p107 = por %p105, %p106
      %p108 = scmp.ne.s32.totalorder %s97, %s98
      %p109 = scmp.eq.s32.totalorder %s23, 0
      %p110 = por %p108, %p109
      %p111 = scmp.ne.s32.totalorder %s97, %s98
      %p112 = scmp.eq.s32.totalorder %s24, 3
      %p113 = por %p111, %p112
      %p115 = scmp.ne.s32.totalorder %s98, %s114
      %p116 = scmp.eq.s32.totalorder %s24, 0
      %p117 = por %p115, %p116
      %s118 = ssub.s32 %s25, %s37
      %p119 = scmp.eq.s32.totalorder %s118, 0
      %s121 = sadd.s32 %s120, 1
      %s122 = scalar_select %p119, %s120, %s121
      %p125 = pneg %p119
      %p126 = scmp.eq.s32.totalorder %s18, 3
      %p127 = por %p125, %p126
      %p128 = scmp.ne.s32.totalorder %s120, %s123
      %p129 = scmp.eq.s32.totalorder %s18, 0
      %p130 = por %p128, %p129
      %p131 = scmp.ne.s32.totalorder %s120, %s123
      %p132 = scmp.eq.s32.totalorder %s23, 3
      %p133 = por %p131, %p132
      %p134 = scmp.ne.s32.totalorder %s123, %s124
      %p135 = scmp.eq.s32.totalorder %s23, 0
      %p136 = por %p134, %p135
      %p137 = scmp.ne.s32.totalorder %s123, %s124
      %p138 = scmp.eq.s32.totalorder %s24, 3
      %p139 = por %p137, %p138
      %p141 = scmp.ne.s32.totalorder %s124, %s140
      %p142 = scmp.eq.s32.totalorder %s24, 0
      %p143 = por %p141, %p142
      %p144 = scmp.le.s32.totalorder 1, %s18
      %p145 = scmp.lt.s32.totalorder %s18, 5
      %p146 = pnand %p144, %p145
      %p147 = pneg %p146
      // Predicated region
      $region9: #{tpu_custom_call.1} parent=5 // pred_check
        _
      $region10: #{tpu_custom_call.1} parent=5 // pred_check_branch
        %149 = sbr.rel (%p146) target = $region12
      $region11: #{tpu_custom_call.1} parent=5 // pred_region
        %s150 = ssub.s32 %s18, 1
      $region12: #{tpu_custom_call.1} parent=5 // pred_fallthru
        _
      %p151 = scmp.lt.s32.totalorder %s18, 4
      // Predicated region
      $region13: #{tpu_custom_call.1} parent=5 // pred_check
        %p152 = pneg %p151
      $region14: #{tpu_custom_call.1} parent=5 // pred_check_branch
        %154 = sbr.rel (%p152) target = $region16
      $region15: #{tpu_custom_call.1} parent=5 // pred_region
        // Predicated region
        $region17: #{tpu_custom_call.1} parent=15 // pred_check
          %p155 = pneg %p50
        $region18: #{tpu_custom_call.1} parent=15 // pred_check_branch
          %157 = sbr.rel (%p155) target = $region20
        $region19: #{tpu_custom_call.1} parent=15 // pred_region
          %s158 = sand.u32 %s40, 1
          %s159 = scalar_lea.sflag [#allocation4], %s158
          %s160 = sand.u32 %s40, 1
          %s161 = smul.addr %s160, 256
          %s162 = scalar_lea.vmem [#allocation3], %s161
          %s163 = smul.u32 2, %s26
          %s165 = ssub.s32 4096, 4096
          %166 = vsyncadd %s159, %s165
          %s167 = smul.addr %s163, 128
          %s168 = scalar_lea.hbm %s0, %s167
          %s169 = sshll.u32 %s162, 4
          %s170 = int_to_ptr.vmem [resolvable:$true] %s169
          %175 = dma.hbm_to_vmem [thread:$0]  %s168, 4096, %s170, %s159, 512, 256, 16
        $region20: #{tpu_custom_call.1} parent=15 // pred_fallthru
          _
        // Predicated region
        $region21: #{tpu_custom_call.1} parent=15 // pred_check
          %p176 = pneg %p78
        $region22: #{tpu_custom_call.1} parent=15 // pred_check_branch
          %178 = sbr.rel (%p176) target = $region24
        $region23: #{tpu_custom_call.1} parent=15 // pred_region
          %s179 = sand.u32 %s68, 1
          %s180 = scalar_lea.sflag [#allocation7], %s179
          %s181 = sand.u32 %s68, 1
          %s182 = smul.addr %s181, 256
          %s183 = scalar_lea.vmem [#allocation6], %s182
          %s184 = smul.u32 16, %s25
          %s185 = smul.u32 2, %s26
          %s187 = ssub.s32 4096, 4096
          %188 = vsyncadd %s180, %s187
          %s189 = smul.addr %s184, 4
          %s190 = sadd.s32 %s185, %s189
          %s191 = smul.addr %s190, 128
          %s192 = scalar_lea.hbm %s1, %s191
          %s193 = sshll.u32 %s183, 4
          %s194 = int_to_ptr.vmem [resolvable:$true] %s193
          %199 = dma.hbm_to_vmem [thread:$0]  %s192, 4096, %s194, %s180, 512, 256, 16
        $region24: #{tpu_custom_call.1} parent=15 // pred_fallthru
          _
        // Predicated region
        $region25: #{tpu_custom_call.1} parent=15 // pred_check
          %p200 = pneg %p104
        $region26: #{tpu_custom_call.1} parent=15 // pred_check_branch
          %202 = sbr.rel (%p200) target = $region28
        $region27: #{tpu_custom_call.1} parent=15 // pred_region
          %p203 = scmp.lt.s32.totalorder %s25, 1
          %s204 = scalar_select %p203, %s25, 1
          %s205 = smul.addr %s204, 2
          %s206 = scalar_lea.vmem %s2, %s205
        $region28: #{tpu_custom_call.1} parent=15 // pred_fallthru
          _
      $region16: #{tpu_custom_call.1} parent=5 // pred_fallthru
        _
      %p207 = scmp.le.s32.totalorder 1, %s18
      %p208 = scmp.lt.s32.totalorder %s18, 5
      %p209 = pnand %p207, %p208
      %p210 = pneg %p209
      // Predicated region
      $region29: #{tpu_custom_call.1} parent=5 // pred_check
        _
      $region30: #{tpu_custom_call.1} parent=5 // pred_check_branch
        %212 = sbr.rel (%p209) target = $region32
      $region31: #{tpu_custom_call.1} parent=5 // pred_region
        %s213 = ssub.s32 %s18, 1
        %s214 = sand.u32 %s43, 1
        %s215 = scalar_lea.sflag [#allocation4], %s214
        %s216 = sand.u32 %s43, 1
        %s217 = smul.addr %s216, 256
        %s218 = scalar_lea.vmem [#allocation3], %s217
        // Predicated region
        $region33: #{tpu_custom_call.1} parent=31 // pred_check
          %p219 = pneg %p56
        $region34: #{tpu_custom_call.1} parent=31 // pred_check_branch
          %221 = sbr.rel (%p219) target = $region36
        $region35: #{tpu_custom_call.1} parent=31 // pred_region
          %222 = dma.done %s215, 4096
        $region36: #{tpu_custom_call.1} parent=31 // pred_fallthru
          _
        %s223 = sand.u32 %s71, 1
        %s224 = scalar_lea.sflag [#allocation7], %s223
        %s225 = sand.u32 %s71, 1
        %s226 = smul.addr %s225, 256
        %s227 = scalar_lea.vmem [#allocation6], %s226
        // Predicated region
        $region37: #{tpu_custom_call.1} parent=31 // pred_check
          %p228 = pneg %p84
        $region38: #{tpu_custom_call.1} parent=31 // pred_check_branch
          %230 = sbr.rel (%p228) target = $region40
        $region39: #{tpu_custom_call.1} parent=31 // pred_region
          %231 = dma.done %s224, 4096
        $region40: #{tpu_custom_call.1} parent=31 // pred_fallthru
          _
        %s232 = sand.u32 %s43, 1
        %s233 = scalar_lea.sflag [#allocation4], %s232
        %s234 = sand.u32 %s43, 1
        %s235 = smul.addr %s234, 256
        %s236 = scalar_lea.vmem [#allocation3], %s235
        %p237 = pneg %p56
        %p238 = pneg %p53
        %s239 = sand.u32 %s71, 1
        %s240 = scalar_lea.sflag [#allocation7], %s239
        %s241 = sand.u32 %s71, 1
        %s242 = smul.addr %s241, 256
        %s243 = scalar_lea.vmem [#allocation6], %s242
        %p244 = pneg %p84
        %p245 = pneg %p81
        %p246 = scmp.lt.s32.totalorder %s27, 1
        %s247 = scalar_select %p246, %s27, 1
        %s248 = smul.addr %s247, 2
        %s249 = scalar_lea.vmem %s2, %s248
        %p250 = pneg %p110
        %p251 = pneg %p107
        %p252 = pneg %p136
        %p253 = pneg %p133
        %s254 = sand.u32 %s123, 1
        %s255 = scalar_lea.sflag [#allocation5], %s254
        %s256 = sand.u32 %s123, 1
        %s257 = smul.addr %s256, 128
        %s258 = scalar_lea.vmem [#allocation8], %s257
        %s259 = smul.u32 2, %s28
        %s260 = smul.u32 16, %s27
        %s261 = smul.u32 2, %s28
        %p262 = scmp.lt.s32.totalorder %s27, 1
        %s263 = scalar_select %p262, %s27, 1
        %s264 = smul.addr %s263, 2
        %s265 = scalar_lea.vmem %s2, %s264
        %p267 = scmp.eq.s32.totalorder %s28, 0
        // Predicated region
        $region41: #{tpu_custom_call.1} parent=31 // pred_check
          %p268 = pneg %p267
        $region42: #{tpu_custom_call.1} parent=31 // pred_check_branch
          %270 = sbr.rel (%p268) target = $region44
        $region43: #{tpu_custom_call.1} parent=31 // pred_region
          %271 = vst [vmem:[#allocation2] sm:$0xff] 0.0
          %272 = vst [vmem:[#allocation2 + $0x8] sm:$0xff] 0.0
          %273 = vst [vmem:[#allocation2 + $0x10] sm:$0xff] 0.0
          %274 = vst [vmem:[#allocation2 + $0x18] sm:$0xff] 0.0
          %275 = vst [vmem:[#allocation2 + $0x20] sm:$0xff] 0.0
          %276 = vst [vmem:[#allocation2 + $0x28] sm:$0xff] 0.0
          %277 = vst [vmem:[#allocation2 + $0x30] sm:$0xff] 0.0
          %278 = vst [vmem:[#allocation2 + $0x38] sm:$0xff] 0.0
          %279 = vst [vmem:[#allocation2 + $0x40] sm:$0xff] 0.0
          %280 = vst [vmem:[#allocation2 + $0x48] sm:$0xff] 0.0
          %281 = vst [vmem:[#allocation2 + $0x50] sm:$0xff] 0.0
          %282 = vst [vmem:[#allocation2 + $0x58] sm:$0xff] 0.0
          %283 = vst [vmem:[#allocation2 + $0x60] sm:$0xff] 0.0
          %284 = vst [vmem:[#allocation2 + $0x68] sm:$0xff] 0.0
          %285 = vst [vmem:[#allocation2 + $0x70] sm:$0xff] 0.0
          %286 = vst [vmem:[#allocation2 + $0x78] sm:$0xff] 0.0
        $region44: #{tpu_custom_call.1} parent=31 // pred_fallthru
          _
        %v287 = vld [vmem:[#allocation2] sm:$0xff]
        %v288 = vld [vmem:[#allocation2 + $0x8] sm:$0xff]
        %v289 = vld [vmem:[#allocation2 + $0x10] sm:$0xff]
        %v290 = vld [vmem:[#allocation2 + $0x18] sm:$0xff]
        %v291 = vld [vmem:[#allocation2 + $0x20] sm:$0xff]
        %v292 = vld [vmem:[#allocation2 + $0x28] sm:$0xff]
        %v293 = vld [vmem:[#allocation2 + $0x30] sm:$0xff]
        %v294 = vld [vmem:[#allocation2 + $0x38] sm:$0xff]
        %v295 = vld [vmem:[#allocation2 + $0x40] sm:$0xff]
        %v296 = vld [vmem:[#allocation2 + $0x48] sm:$0xff]
        %v297 = vld [vmem:[#allocation2 + $0x50] sm:$0xff]
        %v298 = vld [vmem:[#allocation2 + $0x58] sm:$0xff]
        %v299 = vld [vmem:[#allocation2 + $0x60] sm:$0xff]
        %v300 = vld [vmem:[#allocation2 + $0x68] sm:$0xff]
        %v301 = vld [vmem:[#allocation2 + $0x70] sm:$0xff]
        %v302 = vld [vmem:[#allocation2 + $0x78] sm:$0xff]
        %v303 = vld [vmem:[%s218] sm:$0xff]
        %v304 = vld [vmem:[%s218 + $0x8] sm:$0xff]
        %v305 = vld [vmem:[%s218 + $0x10] sm:$0xff]
        %v306 = vld [vmem:[%s218 + $0x18] sm:$0xff]
        %v307 = vld [vmem:[%s218 + $0x20] sm:$0xff]
        %v308 = vld [vmem:[%s218 + $0x28] sm:$0xff]
        %v309 = vld [vmem:[%s218 + $0x30] sm:$0xff]
        %v310 = vld [vmem:[%s218 + $0x38] sm:$0xff]
        %v311 = vld [vmem:[%s218 + $0x40] sm:$0xff]
        %v312 = vld [vmem:[%s218 + $0x48] sm:$0xff]
        %v313 = vld [vmem:[%s218 + $0x50] sm:$0xff]
        %v314 = vld [vmem:[%s218 + $0x58] sm:$0xff]
        %v315 = vld [vmem:[%s218 + $0x60] sm:$0xff]
        %v316 = vld [vmem:[%s218 + $0x68] sm:$0xff]
        %v317 = vld [vmem:[%s218 + $0x70] sm:$0xff]
        %v318 = vld [vmem:[%s218 + $0x78] sm:$0xff]
        %v319 = vld [vmem:[%s218 + $0x80] sm:$0xff]
        %v320 = vld [vmem:[%s218 + $0x88] sm:$0xff]
        %v321 = vld [vmem:[%s218 + $0x90] sm:$0xff]
        %v322 = vld [vmem:[%s218 + $0x98] sm:$0xff]
        %v323 = vld [vmem:[%s218 + $0xa0] sm:$0xff]
        %v324 = vld [vmem:[%s218 + $0xa8] sm:$0xff]
        %v325 = vld [vmem:[%s218 + $0xb0] sm:$0xff]
        %v326 = vld [vmem:[%s218 + $0xb8] sm:$0xff]
        %v327 = vld [vmem:[%s218 + $0xc0] sm:$0xff]
        %v328 = vld [vmem:[%s218 + $0xc8] sm:$0xff]
        %v329 = vld [vmem:[%s218 + $0xd0] sm:$0xff]
        %v330 = vld [vmem:[%s218 + $0xd8] sm:$0xff]
        %v331 = vld [vmem:[%s218 + $0xe0] sm:$0xff]
        %v332 = vld [vmem:[%s218 + $0xe8] sm:$0xff]
        %v333 = vld [vmem:[%s218 + $0xf0] sm:$0xff]
        %v334 = vld [vmem:[%s218 + $0xf8] sm:$0xff]
        %v335 = vpack.c.bf16 %v305, %v303
        %v336 = vpack.c.bf16 %v306, %v304
        %v337 = vpack.c.bf16 %v309, %v307
        %v338 = vpack.c.bf16 %v310, %v308
        %v339 = vpack.c.bf16 %v313, %v311
        %v340 = vpack.c.bf16 %v314, %v312
        %v341 = vpack.c.bf16 %v317, %v315
        %v342 = vpack.c.bf16 %v318, %v316
        %v343 = vpack.c.bf16 %v321, %v319
        %v344 = vpack.c.bf16 %v322, %v320
        %v345 = vpack.c.bf16 %v325, %v323
        %v346 = vpack.c.bf16 %v326, %v324
        %v347 = vpack.c.bf16 %v329, %v327
        %v348 = vpack.c.bf16 %v330, %v328
        %v349 = vpack.c.bf16 %v333, %v331
        %v350 = vpack.c.bf16 %v334, %v332
        %v351 = vld [vmem:[%s227] sm:$0xff]
        %v352 = vld [vmem:[%s227 + $0x8] sm:$0xff]
        %v353 = vld [vmem:[%s227 + $0x10] sm:$0xff]
        %v354 = vld [vmem:[%s227 + $0x18] sm:$0xff]
        %v355 = vld [vmem:[%s227 + $0x20] sm:$0xff]
        %v356 = vld [vmem:[%s227 + $0x28] sm:$0xff]
        %v357 = vld [vmem:[%s227 + $0x30] sm:$0xff]
        %v358 = vld [vmem:[%s227 + $0x38] sm:$0xff]
        %v359 = vld [vmem:[%s227 + $0x40] sm:$0xff]
        %v360 = vld [vmem:[%s227 + $0x48] sm:$0xff]
        %v361 = vld [vmem:[%s227 + $0x50] sm:$0xff]
        %v362 = vld [vmem:[%s227 + $0x58] sm:$0xff]
        %v363 = vld [vmem:[%s227 + $0x60] sm:$0xff]
        %v364 = vld [vmem:[%s227 + $0x68] sm:$0xff]
        %v365 = vld [vmem:[%s227 + $0x70] sm:$0xff]
        %v366 = vld [vmem:[%s227 + $0x78] sm:$0xff]
        %v367 = vld [vmem:[%s227 + $0x80] sm:$0xff]
        %v368 = vld [vmem:[%s227 + $0x88] sm:$0xff]
        %v369 = vld [vmem:[%s227 + $0x90] sm:$0xff]
        %v370 = vld [vmem:[%s227 + $0x98] sm:$0xff]
        %v371 = vld [vmem:[%s227 + $0xa0] sm:$0xff]
        %v372 = vld [vmem:[%s227 + $0xa8] sm:$0xff]
        %v373 = vld [vmem:[%s227 + $0xb0] sm:$0xff]
        %v374 = vld [vmem:[%s227 + $0xb8] sm:$0xff]
        %v375 = vld [vmem:[%s227 + $0xc0] sm:$0xff]
        %v376 = vld [vmem:[%s227 + $0xc8] sm:$0xff]
        %v377 = vld [vmem:[%s227 + $0xd0] sm:$0xff]
        %v378 = vld [vmem:[%s227 + $0xd8] sm:$0xff]
        %v379 = vld [vmem:[%s227 + $0xe0] sm:$0xff]
        %v380 = vld [vmem:[%s227 + $0xe8] sm:$0xff]
        %v381 = vld [vmem:[%s227 + $0xf0] sm:$0xff]
        %v382 = vld [vmem:[%s227 + $0xf8] sm:$0xff]
        %v383 = vpack.c.bf16 %v353, %v351
        %v384 = vpack.c.bf16 %v354, %v352
        %v385 = vpack.c.bf16 %v357, %v355
        %v386 = vpack.c.bf16 %v358, %v356
        %v387 = vpack.c.bf16 %v361, %v359
        %v388 = vpack.c.bf16 %v362, %v360
        %v389 = vpack.c.bf16 %v365, %v363
        %v390 = vpack.c.bf16 %v366, %v364
        %v391 = vpack.c.bf16 %v369, %v367
        %v392 = vpack.c.bf16 %v370, %v368
        %v393 = vpack.c.bf16 %v373, %v371
        %v394 = vpack.c.bf16 %v374, %v372
        %v395 = vpack.c.bf16 %v377, %v375
        %v396 = vpack.c.bf16 %v378, %v376
        %v397 = vpack.c.bf16 %v381, %v379
        %v398 = vpack.c.bf16 %v382, %v380
        %399 = vmatprep.subr.bf16.mxu0 %v384
        %400 = vmatpush1.bf16.xpose.msra.mxu0 %v383
        %401 = vmatprep.subr.bf16.mxu0 %v386
        %402 = vmatpush1.bf16.xpose.msra.mxu0 %v385
        %403 = vmatprep.subr.bf16.mxu0 %v388
        %404 = vmatpush1.bf16.xpose.msra.mxu0 %v387
        %405 = vmatprep.subr.bf16.mxu0 %v390
        %406 = vmatpush1.bf16.xpose.msra.mxu0 %v389
        %407 = vmatprep.subr.bf16.mxu0 %v392
        %408 = vmatpush1.bf16.xpose.msra.mxu0 %v391
        %409 = vmatprep.subr.bf16.mxu0 %v394
        %410 = vmatpush1.bf16.xpose.msra.mxu0 %v393
        %411 = vmatprep.subr.bf16.mxu0 %v396
        %412 = vmatpush1.bf16.xpose.msra.mxu0 %v395
        %413 = vmatprep.subr.bf16.mxu0 %v398
        %414 = vmatpush1.bf16.xpose.msra.mxu0 %v397
        %415 = vmatprep.subr.bf16.mxu0 0
        %416 = vmatpush1.bf16.xpose.msra.mxu0 0
        %417 = vmatprep.subr.bf16.mxu0 0
        %418 = vmatpush1.bf16.xpose.msra.mxu0 0
        %419 = vmatprep.subr.bf16.mxu0 0
        %420 = vmatpush1.bf16.xpose.msra.mxu0 0
        %421 = vmatprep.subr.bf16.mxu0 0
        %422 = vmatpush1.bf16.xpose.msra.mxu0 0
        %423 = vmatprep.subr.bf16.mxu0 0
        %424 = vmatpush1.bf16.xpose.msra.mxu0 0
        %425 = vmatprep.subr.bf16.mxu0 0
        %426 = vmatpush1.bf16.xpose.msra.mxu0 0
        %427 = vmatprep.subr.bf16.mxu0 0
        %428 = vmatpush1.bf16.xpose.msra.mxu0 0
        %429 = vmatprep.subr.bf16.mxu0 0
        %430 = vmatpush1.bf16.xpose.msra.mxu0 0
        %431 = vmatprep.mubr.bf16.mxu0 %v336
        %432 = vmatmul.mubr.bf16.gmra.mrb[0].mxu0 %v335
        %v433 = vpop.f32.mrb[0].mxu0
        %v434 = vadd.f32 0.0, %v433
        %v435 = vpop.f32.mrb[0].mxu0
        %v436 = vpop.f32.mrb[0].mxu0
        %v437 = vadd.f32 0.0, %v436
        %v438 = vpop.f32.mrb[0].mxu0
        %439 = vmatprep.mubr.bf16.mxu0 %v338
        %440 = vmatmul.mubr.bf16.gmra.mrb[0].mxu0 %v337
        %v441 = vpop.f32.mrb[0].mxu0
        %v442 = vadd.f32 0.0, %v441
        %v443 = vpop.f32.mrb[0].mxu0
        %v444 = vpop.f32.mrb[0].mxu0
        %v445 = vadd.f32 0.0, %v444
        %v446 = vpop.f32.mrb[0].mxu0
        %447 = vmatprep.mubr.bf16.mxu0 %v340
        %448 = vmatmul.mubr.bf16.gmra.mrb[0].mxu0 %v339
        %v449 = vpop.f32.mrb[0].mxu0
        %v450 = vadd.f32 0.0, %v449
        %v451 = vpop.f32.mrb[0].mxu0
        %v452 = vpop.f32.mrb[0].mxu0
        %v453 = vadd.f32 0.0, %v452
        %v454 = vpop.f32.mrb[0].mxu0
        %455 = vmatprep.mubr.bf16.mxu0 %v342
        %456 = vmatmul.mubr.bf16.gmra.mrb[0].mxu0 %v341
        %v457 = vpop.f32.mrb[0].mxu0
        %v458 = vadd.f32 0.0, %v457
        %v459 = vpop.f32.mrb[0].mxu0
        %v460 = vpop.f32.mrb[0].mxu0
        %v461 = vadd.f32 0.0, %v460
        %v462 = vpop.f32.mrb[0].mxu0
        %463 = vmatprep.mubr.bf16.mxu0 %v344
        %464 = vmatmul.mubr.bf16.gmra.mrb[0].mxu0 %v343
        %v465 = vpop.f32.mrb[0].mxu0
        %v466 = vadd.f32 0.0, %v465
        %v467 = vpop.f32.mrb[0].mxu0
        %v468 = vpop.f32.mrb[0].mxu0
        %v469 = vadd.f32 0.0, %v468
        %v470 = vpop.f32.mrb[0].mxu0
        %471 = vmatprep.mubr.bf16.mxu0 %v346
        %472 = vmatmul.mubr.bf16.gmra.mrb[0].mxu0 %v345
        %v473 = vpop.f32.mrb[0].mxu0
        %v474 = vadd.f32 0.0, %v473
        %v475 = vpop.f32.mrb[0].mxu0
        %v476 = vpop.f32.mrb[0].mxu0
        %v477 = vadd.f32 0.0, %v476
        %v478 = vpop.f32.mrb[0].mxu0
        %479 = vmatprep.mubr.bf16.mxu0 %v348
        %480 = vmatmul.mubr.bf16.gmra.mrb[0].mxu0 %v347
        %v481 = vpop.f32.mrb[0].mxu0
        %v482 = vadd.f32 0.0, %v481
        %v483 = vpop.f32.mrb[0].mxu0
        %v484 = vpop.f32.mrb[0].mxu0
        %v485 = vadd.f32 0.0, %v484
        %v486 = vpop.f32.mrb[0].mxu0
        %487 = vmatprep.mubr.bf16.mxu0 %v350
        %488 = vmatmul.mubr.bf16.gmra.mrb[0].mxu0 %v349
        %v489 = vpop.f32.mrb[0].mxu0
        %v490 = vadd.f32 0.0, %v489
        %v491 = vpop.f32.mrb[0].mxu0
        %v492 = vpop.f32.mrb[0].mxu0
        %v493 = vadd.f32 0.0, %v492
        %v494 = vpop.f32.mrb[0].mxu0
        %495 = vdwg.mxu0
        %v496 = vadd.f32 %v287, %v434
        %v497 = vadd.f32 %v288, %v437
        %v498 = vadd.f32 %v289, %v442
        %v499 = vadd.f32 %v290, %v445
        %v500 = vadd.f32 %v291, %v450
        %v501 = vadd.f32 %v292, %v453
        %v502 = vadd.f32 %v293, %v458
        %v503 = vadd.f32 %v294, %v461
        %v504 = vadd.f32 %v295, %v466
        %v505 = vadd.f32 %v296, %v469
        %v506 = vadd.f32 %v297, %v474
        %v507 = vadd.f32 %v298, %v477
        %v508 = vadd.f32 %v299, %v482
        %v509 = vadd.f32 %v300, %v485
        %v510 = vadd.f32 %v301, %v490
        %v511 = vadd.f32 %v302, %v493
        %512 = vst [vmem:[#allocation2] sm:$0xff] %v496
        %513 = vst [vmem:[#allocation2 + $0x8] sm:$0xff] %v497
        %514 = vst [vmem:[#allocation2 + $0x10] sm:$0xff] %v498
        %515 = vst [vmem:[#allocation2 + $0x18] sm:$0xff] %v499
        %516 = vst [vmem:[#allocation2 + $0x20] sm:$0xff] %v500
        %517 = vst [vmem:[#allocation2 + $0x28] sm:$0xff] %v501
        %518 = vst [vmem:[#allocation2 + $0x30] sm:$0xff] %v502
        %519 = vst [vmem:[#allocation2 + $0x38] sm:$0xff] %v503
        %520 = vst [vmem:[#allocation2 + $0x40] sm:$0xff] %v504
        %521 = vst [vmem:[#allocation2 + $0x48] sm:$0xff] %v505
        %522 = vst [vmem:[#allocation2 + $0x50] sm:$0xff] %v506
        %523 = vst [vmem:[#allocation2 + $0x58] sm:$0xff] %v507
        %524 = vst [vmem:[#allocation2 + $0x60] sm:$0xff] %v508
        %525 = vst [vmem:[#allocation2 + $0x68] sm:$0xff] %v509
        %526 = vst [vmem:[#allocation2 + $0x70] sm:$0xff] %v510
        %527 = vst [vmem:[#allocation2 + $0x78] sm:$0xff] %v511
        %p528 = scmp.eq.s32.totalorder %s28, 1
        // Predicated region
        $region45: #{tpu_custom_call.1} parent=31 // pred_check
          %p529 = pneg %p528
        $region46: #{tpu_custom_call.1} parent=31 // pred_check_branch
          %531 = sbr.rel (%p529) target = $region48
        $region47: #{tpu_custom_call.1} parent=31 // pred_region
          %v532 = vld [vmem:[#allocation2] sm:$0xff]
          %v533 = vld [vmem:[#allocation2 + $0x8] sm:$0xff]
          %v534 = vld [vmem:[#allocation2 + $0x10] sm:$0xff]
          %v535 = vld [vmem:[#allocation2 + $0x18] sm:$0xff]
          %v536 = vld [vmem:[#allocation2 + $0x20] sm:$0xff]
          %v537 = vld [vmem:[#allocation2 + $0x28] sm:$0xff]
          %v538 = vld [vmem:[#allocation2 + $0x30] sm:$0xff]
          %v539 = vld [vmem:[#allocation2 + $0x38] sm:$0xff]
          %v540 = vld [vmem:[#allocation2 + $0x40] sm:$0xff]
          %v541 = vld [vmem:[#allocation2 + $0x48] sm:$0xff]
          %v542 = vld [vmem:[#allocation2 + $0x50] sm:$0xff]
          %v543 = vld [vmem:[#allocation2 + $0x58] sm:$0xff]
          %v544 = vld [vmem:[#allocation2 + $0x60] sm:$0xff]
          %v545 = vld [vmem:[#allocation2 + $0x68] sm:$0xff]
          %v546 = vld [vmem:[#allocation2 + $0x70] sm:$0xff]
          %v547 = vld [vmem:[#allocation2 + $0x78] sm:$0xff]
          %v548 = vadd.f32 %v532, %v533
          %v549 = vadd.f32 %v548, %v534
          %v550 = vadd.f32 %v549, %v535
          %v551 = vadd.f32 %v550, %v536
          %v552 = vadd.f32 %v551, %v537
          %v553 = vadd.f32 %v552, %v538
          %v554 = vadd.f32 %v553, %v539
          %v555 = vadd.f32 %v554, %v540
          %v556 = vadd.f32 %v555, %v541
          %v557 = vadd.f32 %v556, %v542
          %v558 = vadd.f32 %v557, %v543
          %v559 = vadd.f32 %v558, %v544
          %v560 = vadd.f32 %v559, %v545
          %v561 = vadd.f32 %v560, %v546
          %v562 = vadd.f32 %v561, %v547
          %v563 = vrot.slane %v562, 4
          %v564 = vadd.f32 %v562, %v563
          %v565 = vrot.slane %v564, 2
          %v566 = vadd.f32 %v564, %v565
          %v567 = vrot.slane %v566, 1
          %v568 = vadd.f32 %v566, %v567
          %v569 = vmul.f32 %v532, %v532
          %v570 = vmul.f32 %v533, %v533
          %v571 = vmul.f32 %v534, %v534
          %v572 = vmul.f32 %v535, %v535
          %v573 = vmul.f32 %v536, %v536
          %v574 = vmul.f32 %v537, %v537
          %v575 = vmul.f32 %v538, %v538
          %v576 = vmul.f32 %v539, %v539
          %v577 = vmul.f32 %v540, %v540
          %v578 = vmul.f32 %v541, %v541
          %v579 = vmul.f32 %v542, %v542
          %v580 = vmul.f32 %v543, %v543
          %v581 = vmul.f32 %v544, %v544
          %v582 = vmul.f32 %v545, %v545
          %v583 = vmul.f32 %v546, %v546
          %v584 = vmul.f32 %v547, %v547
          %v585 = vadd.f32 %v569, %v570
          %v586 = vadd.f32 %v585, %v571
          %v587 = vadd.f32 %v586, %v572
          %v588 = vadd.f32 %v587, %v573
          %v589 = vadd.f32 %v588, %v574
          %v590 = vadd.f32 %v589, %v575
          %v591 = vadd.f32 %v590, %v576
          %v592 = vadd.f32 %v591, %v577
          %v593 = vadd.f32 %v592, %v578
          %v594 = vadd.f32 %v593, %v579
          %v595 = vadd.f32 %v594, %v580
          %v596 = vadd.f32 %v595, %v581
          %v597 = vadd.f32 %v596, %v582
          %v598 = vadd.f32 %v597, %v583
          %v599 = vadd.f32 %v598, %v584
          %v600 = vrot.slane %v599, 4
          %v601 = vadd.f32 %v599, %v600
          %v602 = vrot.slane %v601, 2
          %v603 = vadd.f32 %v601, %v602
          %v604 = vrot.slane %v603, 1
          %v605 = vadd.f32 %v603, %v604
          %v606 = vmul.f32 %v568, 0.0078125
          %v607 = vmul.f32 %v605, 0.0078125
          %v608 = vmul.f32 %v606, %v606
          %v609 = vsub.f32 %v607, %v608
          %v610 = vmax.f32 %v609, 0.0
          %v611 = vld [vmem:[%s265] sm:$0x1]
          %v612 = vld [vmem:[%s265 + $0x1] sm:$0x1]
          %v613 = vadd.f32 %v610, 1e-05
          %v614 = vrsqrt.pop %v613
          %v615 = vmul.f32 %v611, %v614
          %v616 = vmul.f32 %v606, %v615
          %v617 = vsub.f32 %v612, %v616
          %v618 = vlaneseq
          %v619 = vshrl.u32 %v618, 7
          %v620 = vsub.s32 0, %v619
          %v621 = vrot.slane %v615, %v620
          %v622 = vmul.f32 %v532, %v621
          %v623 = vmul.f32 %v533, %v621
          %v624 = vmul.f32 %v534, %v621
          %v625 = vmul.f32 %v535, %v621
          %v626 = vmul.f32 %v536, %v621
          %v627 = vmul.f32 %v537, %v621
          %v628 = vmul.f32 %v538, %v621
          %v629 = vmul.f32 %v539, %v621
          %v630 = vmul.f32 %v540, %v621
          %v631 = vmul.f32 %v541, %v621
          %v632 = vmul.f32 %v542, %v621
          %v633 = vmul.f32 %v543, %v621
          %v634 = vmul.f32 %v544, %v621
          %v635 = vmul.f32 %v545, %v621
          %v636 = vmul.f32 %v546, %v621
          %v637 = vmul.f32 %v547, %v621
          %v638 = vlaneseq
          %v639 = vshrl.u32 %v638, 7
          %v640 = vsub.s32 0, %v639
          %v641 = vrot.slane %v617, %v640
          %v642 = vadd.f32 %v622, %v641
          %v643 = vadd.f32 %v623, %v641
          %v644 = vadd.f32 %v624, %v641
          %v645 = vadd.f32 %v625, %v641
          %v646 = vadd.f32 %v626, %v641
          %v647 = vadd.f32 %v627, %v641
          %v648 = vadd.f32 %v628, %v641
          %v649 = vadd.f32 %v629, %v641
          %v650 = vadd.f32 %v630, %v641
          %v651 = vadd.f32 %v631, %v641
          %v652 = vadd.f32 %v632, %v641
          %v653 = vadd.f32 %v633, %v641
          %v654 = vadd.f32 %v634, %v641
          %v655 = vadd.f32 %v635, %v641
          %v656 = vadd.f32 %v636, %v641
          %v657 = vadd.f32 %v637, %v641
          %v658 = vmax.f32 %v642, 0.0
          %v659 = vmax.f32 %v643, 0.0
          %v660 = vmax.f32 %v644, 0.0
          %v661 = vmax.f32 %v645, 0.0
          %v662 = vmax.f32 %v646, 0.0
          %v663 = vmax.f32 %v647, 0.0
          %v664 = vmax.f32 %v648, 0.0
          %v665 = vmax.f32 %v649, 0.0
          %v666 = vmax.f32 %v650, 0.0
          %v667 = vmax.f32 %v651, 0.0
          %v668 = vmax.f32 %v652, 0.0
          %v669 = vmax.f32 %v653, 0.0
          %v670 = vmax.f32 %v654, 0.0
          %v671 = vmax.f32 %v655, 0.0
          %v672 = vmax.f32 %v656, 0.0
          %v673 = vmax.f32 %v657, 0.0
          %674 = vst [vmem:[%s258] sm:$0xff] %v658
          %675 = vst [vmem:[%s258 + $0x8] sm:$0xff] %v659
          %676 = vst [vmem:[%s258 + $0x10] sm:$0xff] %v660
          %677 = vst [vmem:[%s258 + $0x18] sm:$0xff] %v661
          %678 = vst [vmem:[%s258 + $0x20] sm:$0xff] %v662
          %679 = vst [vmem:[%s258 + $0x28] sm:$0xff] %v663
          %680 = vst [vmem:[%s258 + $0x30] sm:$0xff] %v664
          %681 = vst [vmem:[%s258 + $0x38] sm:$0xff] %v665
          %682 = vst [vmem:[%s258 + $0x40] sm:$0xff] %v666
          %683 = vst [vmem:[%s258 + $0x48] sm:$0xff] %v667
          %684 = vst [vmem:[%s258 + $0x50] sm:$0xff] %v668
          %685 = vst [vmem:[%s258 + $0x58] sm:$0xff] %v669
          %686 = vst [vmem:[%s258 + $0x60] sm:$0xff] %v670
          %687 = vst [vmem:[%s258 + $0x68] sm:$0xff] %v671
          %688 = vst [vmem:[%s258 + $0x70] sm:$0xff] %v672
          %689 = vst [vmem:[%s258 + $0x78] sm:$0xff] %v673
        $region48: #{tpu_custom_call.1} parent=31 // pred_fallthru
          _
        %s690 = sand.u32 %s123, 1
        %s691 = scalar_lea.sflag [#allocation5], %s690
        %s692 = sand.u32 %s123, 1
        %s693 = smul.addr %s692, 128
        %s694 = scalar_lea.vmem [#allocation8], %s693
        // Predicated region
        $region49: #{tpu_custom_call.1} parent=31 // pred_check
          %p695 = pneg %p133
        $region50: #{tpu_custom_call.1} parent=31 // pred_check_branch
          %697 = sbr.rel (%p695) target = $region52
        $region51: #{tpu_custom_call.1} parent=31 // pred_region
          %s699 = ssub.s32 2048, 2048
          %700 = vsyncadd %s691, %s699
          %s701 = smul.addr %s27, 128
          %s702 = scalar_lea.hbm %s3, %s701
          %s703 = sshll.u32 %s694, 4
          %s704 = int_to_ptr.vmem [resolvable:$true] %s703
          %709 = dma.vmem_to_hbm [thread:$0]  %s704, 2048, %s702, %s691, 128, 256, 8
        $region52: #{tpu_custom_call.1} parent=31 // pred_fallthru
          _
      $region32: #{tpu_custom_call.1} parent=5 // pred_fallthru
        _
      %p710 = scmp.le.s32.totalorder 2, %s18
      // Predicated region
      $region53: #{tpu_custom_call.1} parent=5 // pred_check
        %p711 = pneg %p710
      $region54: #{tpu_custom_call.1} parent=5 // pred_check_branch
        %713 = sbr.rel (%p711) target = $region56
      $region55: #{tpu_custom_call.1} parent=5 // pred_region
        %s714 = ssub.s32 %s18, 2
        // Predicated region
        $region57: #{tpu_custom_call.1} parent=55 // pred_check
          %p715 = pneg %p139
        $region58: #{tpu_custom_call.1} parent=55 // pred_check_branch
          %717 = sbr.rel (%p715) target = $region60
        $region59: #{tpu_custom_call.1} parent=55 // pred_region
          %s718 = sand.u32 %s124, 1
          %s719 = scalar_lea.sflag [#allocation5], %s718
          %s720 = sand.u32 %s124, 1
          %s721 = smul.addr %s720, 128
          %s722 = scalar_lea.vmem [#allocation8], %s721
          %723 = dma.done %s719, 2048
        $region60: #{tpu_custom_call.1} parent=55 // pred_fallthru
          _
      $region56: #{tpu_custom_call.1} parent=5 // pred_fallthru
        _
    $region6: #{tpu_custom_call.1} parent=1 // loop_footer
      %s22 = sadd.s32 1, %s18
    $region7: #{tpu_custom_call.1} parent=1 // loop_footer_branch
      %17 = sbr.rel target = $region3
    $region8: #{tpu_custom_call.1} parent=1 // loop_exit
      _
    %724 = vsyncpa [#allocation4], 1
    %s725 = scalar_lea.sflag [#allocation4], 1
    %726 = vsyncpa %s725, 1
    %727 = vsyncpa [#allocation7], 1
    %s728 = scalar_lea.sflag [#allocation7], 1
    %729 = vsyncpa %s728, 1
    %730 = vsyncpa [#allocation5], 1
    %s731 = scalar_lea.sflag [#allocation5], 1
    %732 = vsyncpa %s731, 1

</llo_original>
